<compile_context>
chip_gen: v5e
topology: v5e:2x2
jax: 0.10.0
libtpu: 0.0.40
codegen_flags: <defaults>
</compile_context>

<pallas_src>
import functools

import jax
import jax.numpy as jnp
from jax.experimental import pallas as pl
from jax.experimental.pallas import tpu as pltpu


def _myloss_kernel(a_ref, p_ref, n_ref, nn_ref, sig_ref, o_ref, acc_ref,
                   *, margin, alpha1, alpha2, eps, inv_batch):
    i = pl.program_id(0)

    @pl.when(i == 0)
    def _():
        acc_ref[...] = jnp.zeros_like(acc_ref)

    a = a_ref[...]       # (tile_b, D)
    p = p_ref[...]
    n = n_ref[...]
    q = nn_ref[...]      # "nn" embedding

    def pdist(u, v):
        d = u - v + eps
        # lane-axis (XLU) reduction -> (tile_b, 1); sqrt goes to the EUP slot
        return jnp.sqrt(jnp.sum(d * d, axis=-1, keepdims=True))

    d_ap = pdist(a, p)   # dist(anchor, pos)
    d_nq = pdist(n, q)   # dist(neg, nn)
    d_an = pdist(a, n)   # dist(anchor, neg)
    d_aq = pdist(a, q)   # dist(anchor, nn)

    quad = jnp.maximum(margin + d_ap - d_nq, 0.0)   # Quadrupletloss hinge
    tml1 = jnp.maximum(d_ap - d_an + margin, 0.0)   # TML(anchor, pos, neg)
    tml2 = jnp.maximum(d_an - d_aq + margin, 0.0)   # TML(anchor, neg, nn)

    s0 = sig_ref[:, 0:1]                            # (1, 1)
    s1 = sig_ref[:, 1:2]                            # (1, 1)
    w0 = 0.5 / (s0 * s0)                            # 1 / (2*sigma0^2)
    w1 = 0.5 / (s1 * s1)                            # 1 / (2*sigma1^2)

    # sigma weighting is linear, so weight the per-tile partial sums directly:
    # one resident (1,1) accumulator instead of three.
    acc_ref[...] += (w0 * jnp.sum(quad + tml1, axis=0, keepdims=True)
                     + w1 * jnp.sum(tml2, axis=0, keepdims=True))

    @pl.when(i == pl.num_programs(0) - 1)
    def _():
        loss_tml = acc_ref[...] * inv_batch          # sums -> means
        o_ref[...] = (alpha1 * loss_tml + alpha2).astype(o_ref.dtype)


def _pick_tile_b(batch):
    """Largest sublane-aligned tile that divides B and gives >= 2 grid steps."""
    if batch % 8 != 0:
        return batch                     # ragged batch: single full-array block
    for t in (512, 256, 128, 64, 32, 16, 8):
        if t <= batch and batch % t == 0 and batch // t >= 2:
            return t
    return batch


def myloss_forward(embed_anchor, embed_pos, embed_neg, embed_nn, sigma_weight,
                   *, alpha1, alpha2, margin, eps=1e-6, tile_b=None):
    """embed_*: (B, D) f32; sigma_weight: (2, 1) f32. Returns scalar loss."""
    B, D = embed_anchor.shape
    for e in (embed_pos, embed_neg, embed_nn):
        assert e.shape == (B, D)

    if tile_b is None:
        tile_b = _pick_tile_b(B)
    assert B % tile_b == 0
    assert tile_b % 8 == 0 or tile_b == B

    sig = sigma_weight.reshape(1, 2).astype(jnp.float32)   # 8 bytes, resident

    emb_spec = pl.BlockSpec((tile_b, D), lambda i: (i, 0))
    grid = (B // tile_b,)

    # VMEM budget: 4 streamed inputs, double-buffered, plus headroom;
    # capped at 32 MiB so the same setting is safe on v5e/v6e/v7x.
    needed = 4 * 2 * tile_b * D * 4
    vmem_limit = int(min(32 * 1024 * 1024, max(4 * 1024 * 1024, 3 * needed)))

    kernel = functools.partial(
        _myloss_kernel,
        margin=float(margin), alpha1=float(alpha1), alpha2=float(alpha2),
        eps=float(eps), inv_batch=1.0 / B)

    out = pl.pallas_call(
        kernel,
        out_shape=jax.ShapeDtypeStruct((1, 1), jnp.float32),
        grid=grid,
        in_specs=[
            emb_spec,                                  # anchor
            emb_spec,                                  # positive
            emb_spec,                                  # negative
            emb_spec,                                  # nn (second negative)
            pl.BlockSpec((1, 2), lambda i: (0, 0)),    # sigma_weight (constant block)
        ],
        out_specs=pl.BlockSpec((1, 1), lambda i: (0, 0)),
        scratch_shapes=[pltpu.VMEM((1, 1), jnp.float32)],
        compiler_params=pltpu.CompilerParams(
            dimension_semantics=("arbitrary",),        # batch axis is a reduction
            vmem_limit_bytes=vmem_limit),
    )(embed_anchor, embed_pos, embed_neg, embed_nn, sig)
    return out[0, 0]


def reference_loss(a, p, n, q, sigma_weight, *, alpha1, alpha2, margin, eps=1e-6):
    def pdist(u, v):
        return jnp.sqrt(jnp.sum((u - v + eps) ** 2, axis=-1))
    d_ap = pdist(a, p)
    d_nq = pdist(n, q)
    d_an = pdist(a, n)
    d_aq = pdist(a, q)
    quad = jnp.mean(jnp.maximum(margin + d_ap - d_nq, 0.0))
    tml1 = jnp.mean(jnp.maximum(d_ap - d_an + margin, 0.0))
    tml2 = jnp.mean(jnp.maximum(d_an - d_aq + margin, 0.0))
    s0 = sigma_weight[0, 0]
    s1 = sigma_weight[1, 0]
    w0 = 1.0 / (2.0 * s0 * s0)
    w1 = 1.0 / (2.0 * s1 * s1)
    loss_tml = w0 * quad + w0 * tml1 + w1 * tml2
    return alpha1 * loss_tml + alpha2 * 1.0


if __name__ == "__main__":
    # module hyperparameters (constructor args of MyLoss)
    alpha1, alpha2, margin = 1.0, 0.5, 1.0

    # small but TPU-friendly shapes: lane-dense D=128, sublane-aligned tiles,
    # 2 grid steps (tile_b = 8) so the BlockSpec pipeline actually overlaps.
    batch, dim = 16, 128

    key = jax.random.PRNGKey(0)
    k_a, k_p, k_n, k_q, k_s = jax.random.split(key, 5)

    a = jax.random.normal(k_a, (batch, dim), dtype=jnp.float32)
    p = jax.random.normal(k_p, (batch, dim), dtype=jnp.float32)
    n = jax.random.normal(k_n, (batch, dim), dtype=jnp.float32)
    q = jax.random.normal(k_q, (batch, dim), dtype=jnp.float32)

    # sigma_weight: nn.Parameter(torch.Tensor(2, 1)) with xavier_uniform_ init
    bound = (6.0 / (1 + 2)) ** 0.5
    sigma = jax.random.uniform(k_s, (2, 1), minval=-bound, maxval=bound,
                               dtype=jnp.float32)

    out = myloss_forward(a, p, n, q, sigma,
                         alpha1=alpha1, alpha2=alpha2, margin=margin)
    out = jax.block_until_ready(out)

    ref = reference_loss(a, p, n, q, sigma,
                         alpha1=alpha1, alpha2=alpha2, margin=margin)
    assert out.shape == ()
    assert jnp.allclose(out, ref, rtol=1e-5, atol=1e-5), (out, ref)

    print("KERNEL_OK")
</pallas_src>

<mosaic_0001>
module attributes {stable_mosaic.version = 11 : i64} {
  func.func @_myloss_kernel(%arg0: i32, %arg1: memref<8x128xf32, #tpu.memory_space<vmem>>, %arg2: memref<8x128xf32, #tpu.memory_space<vmem>>, %arg3: memref<8x128xf32, #tpu.memory_space<vmem>>, %arg4: memref<8x128xf32, #tpu.memory_space<vmem>>, %arg5: memref<1x2xf32, #tpu.memory_space<vmem>>, %arg6: memref<1x1xf32, #tpu.memory_space<vmem>>, %arg7: memref<1x1xf32, #tpu.memory_space<vmem>>) attributes {dimension_semantics = [#tpu.dimension_semantics<arbitrary>], iteration_bounds = array<i64: 2>, scalar_prefetch = 0 : i64, scratch_operands = 1 : i64, tpu.core_type = #tpu.core_type<tc>, window_params = [{transform_indices = @transform_0, window_bounds = array<i64: 8, 128>}, {transform_indices = @transform_1, window_bounds = array<i64: 8, 128>}, {transform_indices = @transform_2, window_bounds = array<i64: 8, 128>}, {transform_indices = @transform_3, window_bounds = array<i64: 8, 128>}, {pipeline_mode = #tpu.pipeline_mode<synchronous>, transform_indices = @transform_4, window_bounds = array<i64: 1, 2>}, {pipeline_mode = #tpu.pipeline_mode<synchronous>, transform_indices = @transform_5, window_bounds = array<i64: 1, 1>}]} {
    %c0_i32 = arith.constant 0 : i32
    %0 = arith.cmpi eq, %arg0, %c0_i32 : i32
    %1 = arith.extui %0 : i1 to i32
    %c0_i32_0 = arith.constant 0 : i32
    %2 = arith.cmpi ne, %1, %c0_i32_0 : i32
    scf.if %2 {
      %cst_33 = arith.constant 0.000000e+00 : f32
      %72 = vector.broadcast %cst_33 : f32 to vector<1x1xf32>
      %c0_34 = arith.constant 0 : index
      %c0_35 = arith.constant 0 : index
      %73 = vector.load %arg7[%c0_34, %c0_35] : memref<1x1xf32, #tpu.memory_space<vmem>>, vector<1x1xf32>
      tpu.vector_store %arg7[%c0_34, %c0_35], %72 {strides = array<i32>} : memref<1x1xf32, #tpu.memory_space<vmem>>, vector<1x1xf32>,
    } else {
    }
    %c0 = arith.constant 0 : index
    %c0_1 = arith.constant 0 : index
    %3 = vector.load %arg1[%c0, %c0_1] : memref<8x128xf32, #tpu.memory_space<vmem>>, vector<8x128xf32>
    %c0_2 = arith.constant 0 : index
    %c0_3 = arith.constant 0 : index
    %4 = vector.load %arg2[%c0_2, %c0_3] : memref<8x128xf32, #tpu.memory_space<vmem>>, vector<8x128xf32>
    %c0_4 = arith.constant 0 : index
    %c0_5 = arith.constant 0 : index
    %5 = vector.load %arg3[%c0_4, %c0_5] : memref<8x128xf32, #tpu.memory_space<vmem>>, vector<8x128xf32>
    %c0_6 = arith.constant 0 : index
    %c0_7 = arith.constant 0 : index
    %6 = vector.load %arg4[%c0_6, %c0_7] : memref<8x128xf32, #tpu.memory_space<vmem>>, vector<8x128xf32>
    %7 = arith.subf %3, %4 : vector<8x128xf32>
    %cst = arith.constant 9.99999997E-7 : f32
    %8 = vector.broadcast %cst : f32 to vector<8x128xf32>
    %9 = arith.addf %7, %8 : vector<8x128xf32>
    %10 = arith.mulf %9, %9 : vector<8x128xf32>
    %cst_8 = arith.constant dense<0.000000e+00> : vector<8xf32>
    %11 = vector.multi_reduction <add>, %10, %cst_8 [1] : vector<8x128xf32> to vector<8xf32>
    %12 = vector.shape_cast %11 : vector<8xf32> to vector<8x1xf32>
    %13 = math.sqrt %12 : vector<8x1xf32>
    %14 = arith.subf %5, %6 : vector<8x128xf32>
    %cst_9 = arith.constant 9.99999997E-7 : f32
    %15 = vector.broadcast %cst_9 : f32 to vector<8x128xf32>
    %16 = arith.addf %14, %15 : vector<8x128xf32>
    %17 = arith.mulf %16, %16 : vector<8x128xf32>
    %cst_10 = arith.constant dense<0.000000e+00> : vector<8xf32>
    %18 = vector.multi_reduction <add>, %17, %cst_10 [1] : vector<8x128xf32> to vector<8xf32>
    %19 = vector.shape_cast %18 : vector<8xf32> to vector<8x1xf32>
    %20 = math.sqrt %19 : vector<8x1xf32>
    %21 = arith.subf %3, %5 : vector<8x128xf32>
    %cst_11 = arith.constant 9.99999997E-7 : f32
    %22 = vector.broadcast %cst_11 : f32 to vector<8x128xf32>
    %23 = arith.addf %21, %22 : vector<8x128xf32>
    %24 = arith.mulf %23, %23 : vector<8x128xf32>
    %cst_12 = arith.constant dense<0.000000e+00> : vector<8xf32>
    %25 = vector.multi_reduction <add>, %24, %cst_12 [1] : vector<8x128xf32> to vector<8xf32>
    %26 = vector.shape_cast %25 : vector<8xf32> to vector<8x1xf32>
    %27 = math.sqrt %26 : vector<8x1xf32>
    %28 = arith.subf %3, %6 : vector<8x128xf32>
    %cst_13 = arith.constant 9.99999997E-7 : f32
    %29 = vector.broadcast %cst_13 : f32 to vector<8x128xf32>
    %30 = arith.addf %28, %29 : vector<8x128xf32>
    %31 = arith.mulf %30, %30 : vector<8x128xf32>
    %cst_14 = arith.constant dense<0.000000e+00> : vector<8xf32>
    %32 = vector.multi_reduction <add>, %31, %cst_14 [1] : vector<8x128xf32> to vector<8xf32>
    %33 = vector.shape_cast %32 : vector<8xf32> to vector<8x1xf32>
    %34 = math.sqrt %33 : vector<8x1xf32>
    %cst_15 = arith.constant 1.000000e+00 : f32
    %35 = vector.broadcast %cst_15 : f32 to vector<8x1xf32>
    %36 = arith.addf %35, %13 : vector<8x1xf32>
    %37 = arith.subf %36, %20 : vector<8x1xf32>
    %cst_16 = arith.constant 0.000000e+00 : f32
    %38 = vector.broadcast %cst_16 : f32 to vector<8x1xf32>
    %39 = arith.maximumf %37, %38 : vector<8x1xf32>
    %40 = arith.subf %13, %27 : vector<8x1xf32>
    %cst_17 = arith.constant 1.000000e+00 : f32
    %41 = vector.broadcast %cst_17 : f32 to vector<8x1xf32>
    %42 = arith.addf %40, %41 : vector<8x1xf32>
    %cst_18 = arith.constant 0.000000e+00 : f32
    %43 = vector.broadcast %cst_18 : f32 to vector<8x1xf32>
    %44 = arith.maximumf %42, %43 : vector<8x1xf32>
    %45 = arith.subf %27, %34 : vector<8x1xf32>
    %cst_19 = arith.constant 1.000000e+00 : f32
    %46 = vector.broadcast %cst_19 : f32 to vector<8x1xf32>
    %47 = arith.addf %45, %46 : vector<8x1xf32>
    %cst_20 = arith.constant 0.000000e+00 : f32
    %48 = vector.broadcast %cst_20 : f32 to vector<8x1xf32>
    %49 = arith.maximumf %47, %48 : vector<8x1xf32>
    %c0_21 = arith.constant 0 : index
    %c0_22 = arith.constant 0 : index
    %50 = vector.load %arg5[%c0_21, %c0_22] : memref<1x2xf32, #tpu.memory_space<vmem>>, vector<1x1xf32>
    %c0_23 = arith.constant 0 : index
    %c1 = arith.constant 1 : index
    %51 = vector.load %arg5[%c0_23, %c1] : memref<1x2xf32, #tpu.memory_space<vmem>>, vector<1x1xf32>
    %52 = arith.mulf %50, %50 : vector<1x1xf32>
    %cst_24 = arith.constant 5.000000e-01 : f32
    %53 = vector.broadcast %cst_24 : f32 to vector<1x1xf32>
    %54 = arith.divf %53, %52 : vector<1x1xf32>
    %55 = arith.mulf %51, %51 : vector<1x1xf32>
    %cst_25 = arith.constant 5.000000e-01 : f32
    %56 = vector.broadcast %cst_25 : f32 to vector<1x1xf32>
    %57 = arith.divf %56, %55 : vector<1x1xf32>
    %c0_26 = arith.constant 0 : index
    %c0_27 = arith.constant 0 : index
    %58 = vector.load %arg7[%c0_26, %c0_27] : memref<1x1xf32, #tpu.memory_space<vmem>>, vector<1x1xf32>
    %59 = arith.addf %39, %44 : vector<8x1xf32>
    %cst_28 = arith.constant dense<0.000000e+00> : vector<1xf32>
    %60 = vector.multi_reduction <add>, %59, %cst_28 [0] : vector<8x1xf32> to vector<1xf32>
    %61 = vector.shape_cast %60 : vector<1xf32> to vector<1x1xf32>
    %62 = arith.mulf %54, %61 : vector<1x1xf32>
    %cst_29 = arith.constant dense<0.000000e+00> : vector<1xf32>
    %63 = vector.multi_reduction <add>, %49, %cst_29 [0] : vector<8x1xf32> to vector<1xf32>
    %64 = vector.shape_cast %63 : vector<1xf32> to vector<1x1xf32>
    %65 = arith.mulf %57, %64 : vector<1x1xf32>
    %66 = arith.addf %62, %65 : vector<1x1xf32>
    %67 = arith.addf %58, %66 : vector<1x1xf32>
    %c0_30 = arith.constant 0 : index
    %c0_31 = arith.constant 0 : index
    %68 = vector.load %arg7[%c0_30, %c0_31] : memref<1x1xf32, #tpu.memory_space<vmem>>, vector<1x1xf32>
    tpu.vector_store %arg7[%c0_30, %c0_31], %67 {strides = array<i32>} : memref<1x1xf32, #tpu.memory_space<vmem>>, vector<1x1xf32>,
    %c1_i32 = arith.constant 1 : i32
    %69 = arith.cmpi eq, %arg0, %c1_i32 : i32
    %70 = arith.extui %69 : i1 to i32
    %c0_i32_32 = arith.constant 0 : i32
    %71 = arith.cmpi ne, %70, %c0_i32_32 : i32
    scf.if %71 {
      %c0_33 = arith.constant 0 : index
      %c0_34 = arith.constant 0 : index
      %72 = vector.load %arg7[%c0_33, %c0_34] : memref<1x1xf32, #tpu.memory_space<vmem>>, vector<1x1xf32>
      %cst_35 = arith.constant 6.250000e-02 : f32
      %73 = vector.broadcast %cst_35 : f32 to vector<1x1xf32>
      %74 = arith.mulf %72, %73 : vector<1x1xf32>
      %cst_36 = arith.constant 1.000000e+00 : f32
      %75 = vector.broadcast %cst_36 : f32 to vector<1x1xf32>
      %76 = arith.mulf %75, %74 : vector<1x1xf32>
      %cst_37 = arith.constant 5.000000e-01 : f32
      %77 = vector.broadcast %cst_37 : f32 to vector<1x1xf32>
      %78 = arith.addf %76, %77 : vector<1x1xf32>
      %c0_38 = arith.constant 0 : index
      %c0_39 = arith.constant 0 : index
      %79 = vector.load %arg6[%c0_38, %c0_39] : memref<1x1xf32, #tpu.memory_space<vmem>>, vector<1x1xf32>
      tpu.vector_store %arg6[%c0_38, %c0_39], %78 {strides = array<i32>} : memref<1x1xf32, #tpu.memory_space<vmem>>, vector<1x1xf32>,
    } else {
    }
    return
  }
  func.func @transform_0(%arg0: i32) -> (i32, i32) {
    %c0_i32 = arith.constant 0 : i32
    %c0_i32_0 = arith.constant 0 : i32
    return %arg0, %c0_i32 : i32, i32
  }
  func.func @transform_1(%arg0: i32) -> (i32, i32) {
    %c0_i32 = arith.constant 0 : i32
    %c0_i32_0 = arith.constant 0 : i32
    return %arg0, %c0_i32 : i32, i32
  }
  func.func @transform_2(%arg0: i32) -> (i32, i32) {
    %c0_i32 = arith.constant 0 : i32
    %c0_i32_0 = arith.constant 0 : i32
    return %arg0, %c0_i32 : i32, i32
  }
  func.func @transform_3(%arg0: i32) -> (i32, i32) {
    %c0_i32 = arith.constant 0 : i32
    %c0_i32_0 = arith.constant 0 : i32
    return %arg0, %c0_i32 : i32, i32
  }
  func.func @transform_4(%arg0: i32) -> (i32, i32) {
    %c0_i32 = arith.constant 0 : i32
    %c0_i32_0 = arith.constant 0 : i32
    %c0_i32_1 = arith.constant 0 : i32
    return %c0_i32, %c0_i32_0 : i32, i32
  }
  func.func @transform_5(%arg0: i32) -> (i32, i32) {
    %c0_i32 = arith.constant 0 : i32
    %c0_i32_0 = arith.constant 0 : i32
    %c0_i32_1 = arith.constant 0 : i32
    return %c0_i32, %c0_i32_0 : i32, i32
  }
}

</mosaic_0001>

<llo_original>
// kernel: tpu_custom_call.1
$region0: #{tpu_custom_call.1}
  #allocation0 [shape = 'u32[]', space=smem, size = 0x4, offset = 0x4, fixed_abs, tag = 'smem constant byte address 0x4 - core index']
  #allocation1 [shape = 'u32[72,128]{1,0:T(1,128)}', space=vmem, size = 0x9000, scoped, tag = 'internal scratch']
  #allocation2 [shape = 'f32[1,1]{1,0:T(1,128)}', space=vmem, size = 0x200, scoped, tag = 'scratch operand']
  %s0 = inlined_call_operand.hbm [shape: f32[16,128], index: 0, kind: input, shape index: {}]
  %s1 = inlined_call_operand.hbm [shape: f32[16,128], index: 1, kind: input, shape index: {}]
  %s2 = inlined_call_operand.hbm [shape: f32[16,128], index: 2, kind: input, shape index: {}]
  %s3 = inlined_call_operand.hbm [shape: f32[16,128], index: 3, kind: input, shape index: {}]
  %s4 = inlined_call_operand.vmem [shape: f32[1,2], index: 4, kind: input, shape index: {}]
  %s5 = inlined_call_operand.hbm [shape: f32[1,1], index: 5, kind: output, shape index: {}]
  %s6 = sld [smem:[#allocation0]]
  $region77: #{tpu_custom_call.1} parent=0
    _
  %s8 = ssub.s32 1, %s6
  %s9 = scalar_select 0, %s8, %s6
  $region1: #{tpu_custom_call.1} parent=0
    #allocation3 [shape = 'u8[8192]{0}', space=vmem, size = 0x2000, scoped, tag = 'input window, operand 0']
    #allocation4 [shape = 's32[2]{0}', space=sflag, size = 0x8, scoped, tag = 'scoped memory for tpu_custom_call.1']
    #allocation5 [shape = 's32[2]{0}', space=sflag, size = 0x8, scoped, tag = 'scoped memory for tpu_custom_call.1']
    #allocation6 [shape = 'u8[8192]{0}', space=vmem, size = 0x2000, scoped, tag = 'input window, operand 1']
    #allocation7 [shape = 's32[2]{0}', space=sflag, size = 0x8, scoped, tag = 'scoped memory for tpu_custom_call.1']
    #allocation8 [shape = 'u8[8192]{0}', space=vmem, size = 0x2000, scoped, tag = 'input window, operand 2']
    #allocation9 [shape = 'u8[8192]{0}', space=vmem, size = 0x2000, scoped, tag = 'input window, operand 3']
    #allocation10 [shape = 's32[2]{0}', space=sflag, size = 0x8, scoped, tag = 'scoped memory for tpu_custom_call.1']
    #allocation11 [shape = 'u8[512]{0}', space=vmem, size = 0x400, scoped, tag = 'output window, operand 0, single buffered']
    %10 = vsyncpa [#allocation4], 0
    %s11 = scalar_lea.sflag [#allocation4], 1
    %12 = vsyncpa %s11, 0
    %13 = vsyncpa [#allocation7], 0
    %s14 = scalar_lea.sflag [#allocation7], 1
    %15 = vsyncpa %s14, 0
    %16 = vsyncpa [#allocation10], 0
    %s17 = scalar_lea.sflag [#allocation10], 1
    %18 = vsyncpa %s17, 0
    %19 = vsyncpa [#allocation5], 0
    loop: start=0, step=1, limit=4
    $region2: #{tpu_custom_call.1} parent=1 // loop_pre_header
      _
    $region3: #{tpu_custom_call.1} parent=1 // loop_header
      %s21 = sphi 0, %s25
      %p22 = scmp.ge.s32.totalorder %s21, 4
      %s31 = sphi 0, %s33
      %s34 = sphi 0, %s31
      %s35 = sphi 0, %s34
      %s51 = sphi 0, %s35
      %s57 = sphi 0, %s59
      %s60 = sphi 0, %s57
      %s61 = sphi 0, %s60
      %s77 = sphi 0, %s61
      %s83 = sphi 0, %s85
      %s86 = sphi 0, %s83
      %s87 = sphi 0, %s86
      %s103 = sphi 0, %s87
      %s109 = sphi 0, %s111
      %s112 = sphi 0, %s109
      %s113 = sphi 0, %s112
      %s129 = sphi 0, %s113
      %s133 = sphi 0, %s133
      %s135 = sphi 0, %s133
      %s136 = sphi 0, %s135
      %s150 = sphi 0, %s136
      %s154 = sphi 0, %s154
      %s156 = sphi 0, %s154
      %s157 = sphi 0, %s156
      %s171 = sphi 0, %s157
    $region4: #{tpu_custom_call.1} parent=1 // loop_header_branch
      %24 = sbr.rel (%p22) target = $region8
    $region5: #{tpu_custom_call.1} parent=1 // loop_body
      %s26 = ssub.s32 %s21, 1
      %s27 = ssub.s32 %s21, 2
      %s28 = sadd.s32 %s21, 1
      %s29 = ssub.s32 %s21, %s28
      %p30 = scmp.eq.s32.totalorder %s29, 0
      %s32 = sadd.s32 %s31, 1
      %s33 = scalar_select %p30, %s31, %s32
      %p36 = pneg %p30
      %p37 = scmp.eq.s32.totalorder %s21, 1
      %p38 = por %p36, %p37
      %p39 = scmp.ne.s32.totalorder %s31, %s34
      %p40 = scmp.eq.s32.totalorder %s21, 0
      %p41 = por %p39, %p40
      %p42 = scmp.ne.s32.totalorder %s31, %s34
      %p43 = scmp.eq.s32.totalorder %s26, 1
      %p44 = por %p42, %p43
      %p45 = scmp.ne.s32.totalorder %s34, %s35
      %p46 = scmp.eq.s32.totalorder %s26, 0
      %p47 = por %p45, %p46
      %p48 = scmp.ne.s32.totalorder %s34, %s35
      %p49 = scmp.eq.s32.totalorder %s27, 1
      %p50 = por %p48, %p49
      %p52 = scmp.ne.s32.totalorder %s35, %s51
      %p53 = scmp.eq.s32.totalorder %s27, 0
      %p54 = por %p52, %p53
      %s55 = ssub.s32 %s21, %s28
      %p56 = scmp.eq.s32.totalorder %s55, 0
      %s58 = sadd.s32 %s57, 1
      %s59 = scalar_select %p56, %s57, %s58
      %p62 = pneg %p56
      %p63 = scmp.eq.s32.totalorder %s21, 1
      %p64 = por %p62, %p63
      %p65 = scmp.ne.s32.totalorder %s57, %s60
      %p66 = scmp.eq.s32.totalorder %s21, 0
      %p67 = por %p65, %p66
      %p68 = scmp.ne.s32.totalorder %s57, %s60
      %p69 = scmp.eq.s32.totalorder %s26, 1
      %p70 = por %p68, %p69
      %p71 = scmp.ne.s32.totalorder %s60, %s61
      %p72 = scmp.eq.s32.totalorder %s26, 0
      %p73 = por %p71, %p72
      %p74 = scmp.ne.s32.totalorder %s60, %s61
      %p75 = scmp.eq.s32.totalorder %s27, 1
      %p76 = por %p74, %p75
      %p78 = scmp.ne.s32.totalorder %s61, %s77
      %p79 = scmp.eq.s32.totalorder %s27, 0
      %p80 = por %p78, %p79
      %s81 = ssub.s32 %s21, %s28
      %p82 = scmp.eq.s32.totalorder %s81, 0
      %s84 = sadd.s32 %s83, 1
      %s85 = scalar_select %p82, %s83, %s84
      %p88 = pneg %p82
      %p89 = scmp.eq.s32.totalorder %s21, 1
      %p90 = por %p88, %p89
      %p91 = scmp.ne.s32.totalorder %s83, %s86
      %p92 = scmp.eq.s32.totalorder %s21, 0
      %p93 = por %p91, %p92
      %p94 = scmp.ne.s32.totalorder %s83, %s86
      %p95 = scmp.eq.s32.totalorder %s26, 1
      %p96 = por %p94, %p95
      %p97 = scmp.ne.s32.totalorder %s86, %s87
      %p98 = scmp.eq.s32.totalorder %s26, 0
      %p99 = por %p97, %p98
      %p100 = scmp.ne.s32.totalorder %s86, %s87
      %p101 = scmp.eq.s32.totalorder %s27, 1
      %p102 = por %p100, %p101
      %p104 = scmp.ne.s32.totalorder %s87, %s103
      %p105 = scmp.eq.s32.totalorder %s27, 0
      %p106 = por %p104, %p105
      %s107 = ssub.s32 %s21, %s28
      %p108 = scmp.eq.s32.totalorder %s107, 0
      %s110 = sadd.s32 %s109, 1
      %s111 = scalar_select %p108, %s109, %s110
      %p114 = pneg %p108
      %p115 = scmp.eq.s32.totalorder %s21, 1
      %p116 = por %p114, %p115
      %p117 = scmp.ne.s32.totalorder %s109, %s112
      %p118 = scmp.eq.s32.totalorder %s21, 0
      %p119 = por %p117, %p118
      %p120 = scmp.ne.s32.totalorder %s109, %s112
      %p121 = scmp.eq.s32.totalorder %s26, 1
      %p122 = por %p120, %p121
      %p123 = scmp.ne.s32.totalorder %s112, %s113
      %p124 = scmp.eq.s32.totalorder %s26, 0
      %p125 = por %p123, %p124
      %p126 = scmp.ne.s32.totalorder %s112, %s113
      %p127 = scmp.eq.s32.totalorder %s27, 1
      %p128 = por %p126, %p127
      %p130 = scmp.ne.s32.totalorder %s113, %s129
      %p131 = scmp.eq.s32.totalorder %s27, 0
      %p132 = por %p130, %p131
      %s134 = sadd.s32 %s133, 1
      %p137 = scmp.eq.s32.totalorder %s21, 1
      %p138 = scmp.ne.s32.totalorder %s133, %s135
      %p139 = scmp.eq.s32.totalorder %s21, 0
      %p140 = por %p138, %p139
      %p141 = scmp.ne.s32.totalorder %s133, %s135
      %p142 = scmp.eq.s32.totalorder %s26, 1
      %p143 = por %p141, %p142
      %p144 = scmp.ne.s32.totalorder %s135, %s136
      %p145 = scmp.eq.s32.totalorder %s26, 0
      %p146 = por %p144, %p145
      %p147 = scmp.ne.s32.totalorder %s135, %s136
      %p148 = scmp.eq.s32.totalorder %s27, 1
      %p149 = por %p147, %p148
      %p151 = scmp.ne.s32.totalorder %s136, %s150
      %p152 = scmp.eq.s32.totalorder %s27, 0
      %p153 = por %p151, %p152
      %s155 = sadd.s32 %s154, 1
      %p158 = scmp.eq.s32.totalorder %s21, 1
      %p159 = scmp.ne.s32.totalorder %s154, %s156
      %p160 = scmp.eq.s32.totalorder %s21, 0
      %p161 = por %p159, %p160
      %p162 = scmp.ne.s32.totalorder %s154, %s156
      %p163 = scmp.eq.s32.totalorder %s26, 1
      %p164 = por %p162, %p163
      %p165 = scmp.ne.s32.totalorder %s156, %s157
      %p166 = scmp.eq.s32.totalorder %s26, 0
      %p167 = por %p165, %p166
      %p168 = scmp.ne.s32.totalorder %s156, %s157
      %p169 = scmp.eq.s32.totalorder %s27, 1
      %p170 = por %p168, %p169
      %p172 = scmp.ne.s32.totalorder %s157, %s171
      %p173 = scmp.eq.s32.totalorder %s27, 0
      %p174 = por %p172, %p173
      %p175 = scmp.le.s32.totalorder 1, %s21
      %p176 = scmp.lt.s32.totalorder %s21, 3
      %p177 = pnand %p175, %p176
      %p178 = pneg %p177
      // Predicated region
      $region9: #{tpu_custom_call.1} parent=5 // pred_check
        _
      $region10: #{tpu_custom_call.1} parent=5 // pred_check_branch
        %180 = sbr.rel (%p177) target = $region12
      $region11: #{tpu_custom_call.1} parent=5 // pred_region
        %s181 = ssub.s32 %s21, 1
        // Predicated region
        $region13: #{tpu_custom_call.1} parent=11 // pred_check
          %p182 = pneg %p146
        $region14: #{tpu_custom_call.1} parent=11 // pred_check_branch
          %184 = sbr.rel (%p182) target = $region16
        $region15: #{tpu_custom_call.1} parent=11 // pred_region
          _
        $region16: #{tpu_custom_call.1} parent=11 // pred_fallthru
          _
      $region12: #{tpu_custom_call.1} parent=5 // pred_fallthru
        _
      %p185 = scmp.lt.s32.totalorder %s21, 2
      // Predicated region
      $region17: #{tpu_custom_call.1} parent=5 // pred_check
        %p186 = pneg %p185
      $region18: #{tpu_custom_call.1} parent=5 // pred_check_branch
        %188 = sbr.rel (%p186) target = $region20
      $region19: #{tpu_custom_call.1} parent=5 // pred_region
        // Predicated region
        $region21: #{tpu_custom_call.1} parent=19 // pred_check
          %p189 = pneg %p41
        $region22: #{tpu_custom_call.1} parent=19 // pred_check_branch
          %191 = sbr.rel (%p189) target = $region24
        $region23: #{tpu_custom_call.1} parent=19 // pred_region
          %s192 = sand.u32 %s31, 1
          %s193 = scalar_lea.sflag [#allocation4], %s192
          %s194 = sand.u32 %s31, 1
          %s195 = smul.addr %s194, 8
          %s196 = scalar_lea.vmem [#allocation3], %s195
          %198 = vsyncadd %s193, 0
          %s199 = smul.addr %s21, 8
          %s200 = scalar_lea.hbm %s0, %s199
          %s202 = sshll.u32 %s200, 4
          %s203 = int_to_ptr.hbm [resolvable:$true] %s202
          %s204 = sshll.u32 %s196, 4
          %s205 = int_to_ptr.vmem [resolvable:$true] %s204
          %207 = dma.hbm_to_vmem [thread:$0]  %s203, 128, %s205, %s193
        $region24: #{tpu_custom_call.1} parent=19 // pred_fallthru
          _
        // Predicated region
        $region25: #{tpu_custom_call.1} parent=19 // pred_check
          %p208 = pneg %p67
        $region26: #{tpu_custom_call.1} parent=19 // pred_check_branch
          %210 = sbr.rel (%p208) target = $region28
        $region27: #{tpu_custom_call.1} parent=19 // pred_region
          %s211 = sand.u32 %s21, 1
          %s212 = scalar_lea.sflag [#allocation7], %s211
          %s213 = sand.u32 %s57, 1
          %s214 = smul.addr %s213, 8
          %s215 = scalar_lea.vmem [#allocation6], %s214
          %217 = vsyncadd %s212, 0
          %s218 = smul.addr %s21, 8
          %s219 = scalar_lea.hbm %s1, %s218
          %s221 = sshll.u32 %s219, 4
          %s222 = int_to_ptr.hbm [resolvable:$true] %s221
          %s223 = sshll.u32 %s215, 4
          %s224 = int_to_ptr.vmem [resolvable:$true] %s223
          %226 = dma.hbm_to_vmem [thread:$0]  %s222, 128, %s224, %s212
        $region28: #{tpu_custom_call.1} parent=19 // pred_fallthru
          _
        // Predicated region
        $region29: #{tpu_custom_call.1} parent=19 // pred_check
          %p227 = pneg %p93
        $region30: #{tpu_custom_call.1} parent=19 // pred_check_branch
          %229 = sbr.rel (%p227) target = $region32
        $region31: #{tpu_custom_call.1} parent=19 // pred_region
          %s230 = sand.u32 %s21, 1
          %s231 = scalar_lea.sflag [#allocation7], %s230
          %s232 = sand.u32 %s83, 1
          %s233 = smul.addr %s232, 8
          %s234 = scalar_lea.vmem [#allocation8], %s233
          %236 = vsyncadd %s231, 0
          %s237 = smul.addr %s21, 8
          %s238 = scalar_lea.hbm %s2, %s237
          %s240 = sshll.u32 %s238, 4
          %s241 = int_to_ptr.hbm [resolvable:$true] %s240
          %s242 = sshll.u32 %s234, 4
          %s243 = int_to_ptr.vmem [resolvable:$true] %s242
          %245 = dma.hbm_to_vmem [thread:$0]  %s241, 128, %s243, %s231
        $region32: #{tpu_custom_call.1} parent=19 // pred_fallthru
          _
        // Predicated region
        $region33: #{tpu_custom_call.1} parent=19 // pred_check
          %p246 = pneg %p119
        $region34: #{tpu_custom_call.1} parent=19 // pred_check_branch
          %248 = sbr.rel (%p246) target = $region36
        $region35: #{tpu_custom_call.1} parent=19 // pred_region
          %s249 = sand.u32 %s109, 1
          %s250 = scalar_lea.sflag [#allocation10], %s249
          %s251 = sand.u32 %s109, 1
          %s252 = smul.addr %s251, 8
          %s253 = scalar_lea.vmem [#allocation9], %s252
          %255 = vsyncadd %s250, 0
          %s256 = smul.addr %s21, 8
          %s257 = scalar_lea.hbm %s3, %s256
          %s259 = sshll.u32 %s257, 4
          %s260 = int_to_ptr.hbm [resolvable:$true] %s259
          %s261 = sshll.u32 %s253, 4
          %s262 = int_to_ptr.vmem [resolvable:$true] %s261
          %264 = dma.hbm_to_vmem [thread:$0]  %s260, 128, %s262, %s250
        $region36: #{tpu_custom_call.1} parent=19 // pred_fallthru
          _
      $region20: #{tpu_custom_call.1} parent=5 // pred_fallthru
        _
      %p265 = scmp.le.s32.totalorder 1, %s21
      %p266 = scmp.lt.s32.totalorder %s21, 3
      %p267 = pnand %p265, %p266
      %p268 = pneg %p267
      // Predicated region
      $region37: #{tpu_custom_call.1} parent=5 // pred_check
        _
      $region38: #{tpu_custom_call.1} parent=5 // pred_check_branch
        %270 = sbr.rel (%p267) target = $region40
      $region39: #{tpu_custom_call.1} parent=5 // pred_region
        %s271 = ssub.s32 %s21, 1
        %s272 = sand.u32 %s34, 1
        %s273 = scalar_lea.sflag [#allocation4], %s272
        %s274 = sand.u32 %s34, 1
        %s275 = smul.addr %s274, 8
        %s276 = scalar_lea.vmem [#allocation3], %s275
        // Predicated region
        $region41: #{tpu_custom_call.1} parent=39 // pred_check
          %p277 = pneg %p47
        $region42: #{tpu_custom_call.1} parent=39 // pred_check_branch
          %279 = sbr.rel (%p277) target = $region44
        $region43: #{tpu_custom_call.1} parent=39 // pred_region
          %281 = dma.done %s273, 128
        $region44: #{tpu_custom_call.1} parent=39 // pred_fallthru
          _
        %s282 = sand.u32 %s26, 1
        %s283 = scalar_lea.sflag [#allocation7], %s282
        %s284 = sand.u32 %s60, 1
        %s285 = smul.addr %s284, 8
        %s286 = scalar_lea.vmem [#allocation6], %s285
        // Predicated region
        $region45: #{tpu_custom_call.1} parent=39 // pred_check
          %p287 = pneg %p73
        $region46: #{tpu_custom_call.1} parent=39 // pred_check_branch
          %289 = sbr.rel (%p287) target = $region48
        $region47: #{tpu_custom_call.1} parent=39 // pred_region
          %291 = dma.done %s283, 128
        $region48: #{tpu_custom_call.1} parent=39 // pred_fallthru
          _
        %s292 = sand.u32 %s26, 1
        %s293 = scalar_lea.sflag [#allocation7], %s292
        %s294 = sand.u32 %s86, 1
        %s295 = smul.addr %s294, 8
        %s296 = scalar_lea.vmem [#allocation8], %s295
        // Predicated region
        $region49: #{tpu_custom_call.1} parent=39 // pred_check
          %p297 = pneg %p99
        $region50: #{tpu_custom_call.1} parent=39 // pred_check_branch
          %299 = sbr.rel (%p297) target = $region52
        $region51: #{tpu_custom_call.1} parent=39 // pred_region
          %301 = dma.done %s293, 128
        $region52: #{tpu_custom_call.1} parent=39 // pred_fallthru
          _
        %s302 = sand.u32 %s112, 1
        %s303 = scalar_lea.sflag [#allocation10], %s302
        %s304 = sand.u32 %s112, 1
        %s305 = smul.addr %s304, 8
        %s306 = scalar_lea.vmem [#allocation9], %s305
        // Predicated region
        $region53: #{tpu_custom_call.1} parent=39 // pred_check
          %p307 = pneg %p125
        $region54: #{tpu_custom_call.1} parent=39 // pred_check_branch
          %309 = sbr.rel (%p307) target = $region56
        $region55: #{tpu_custom_call.1} parent=39 // pred_region
          %311 = dma.done %s303, 128
        $region56: #{tpu_custom_call.1} parent=39 // pred_fallthru
          _
        %s312 = sand.u32 %s34, 1
        %s313 = scalar_lea.sflag [#allocation4], %s312
        %s314 = sand.u32 %s34, 1
        %s315 = smul.addr %s314, 8
        %s316 = scalar_lea.vmem [#allocation3], %s315
        %p317 = pneg %p47
        %p318 = pneg %p44
        %s319 = sand.u32 %s26, 1
        %s320 = scalar_lea.sflag [#allocation7], %s319
        %s321 = sand.u32 %s60, 1
        %s322 = smul.addr %s321, 8
        %s323 = scalar_lea.vmem [#allocation6], %s322
        %p324 = pneg %p73
        %p325 = pneg %p70
        %s326 = sand.u32 %s26, 1
        %s327 = scalar_lea.sflag [#allocation7], %s326
        %s328 = sand.u32 %s86, 1
        %s329 = smul.addr %s328, 8
        %s330 = scalar_lea.vmem [#allocation8], %s329
        %p331 = pneg %p99
        %p332 = pneg %p96
        %s333 = sand.u32 %s112, 1
        %s334 = scalar_lea.sflag [#allocation10], %s333
        %s335 = sand.u32 %s112, 1
        %s336 = smul.addr %s335, 8
        %s337 = scalar_lea.vmem [#allocation9], %s336
        %p338 = pneg %p125
        %p339 = pneg %p122
        %p340 = pneg %p146
        %p341 = pneg %p143
        %p342 = pneg %p167
        %p343 = pneg %p164
        %p344 = scmp.eq.s32.totalorder %s26, 0
        // Predicated region
        $region57: #{tpu_custom_call.1} parent=39 // pred_check
          %p345 = pneg %p344
        $region58: #{tpu_custom_call.1} parent=39 // pred_check_branch
          %347 = sbr.rel (%p345) target = $region60
        $region59: #{tpu_custom_call.1} parent=39 // pred_region
          %vm348 = vcmask 0
          %349 = vst.msk [vmem:[#allocation2] sm:$0x1] %vm348, 0.0
        $region60: #{tpu_custom_call.1} parent=39 // pred_fallthru
          _
        %v350 = vld [vmem:[%s276] sm:$0xff]
        %v351 = vld [vmem:[%s286] sm:$0xff]
        %v352 = vld [vmem:[%s296] sm:$0xff]
        %v353 = vld [vmem:[%s306] sm:$0xff]
        %v354 = vsub.f32 %v350, %v351
        %v355 = vadd.f32 %v354, 1e-06
        %v356 = vmul.f32 %v355, %v355
        %357 = vadd.xlane.f32.xlu0 %v356
        %v358 = vpop.xlane.xlu0 %357
        %v359 = vrsqrt.pop %v358
        %v360 = vmul.f32 %v359, %v358
        %v361 = vmul.f32 %v360, %v359
        %v362 = vmul.f32 0.5, %v361
        %v363 = vsub.f32 1.5, %v362
        %v364 = vmul.f32 %v359, %v363
        %v365 = vmul.f32 %v358, %v364
        %vm366 = vcmp.eq.f32.partialorder %v358, inf
        %v367 = vsel %vm366, %v358, %v365
        %vm368 = vcmp.eq.f32.partialorder %v358, 0.0
        %v369 = vand.u32 %v358, 2147483648
        %v370 = vsel %vm368, %v369, %v367
        %v371 = vsub.f32 %v352, %v353
        %v372 = vadd.f32 %v371, 1e-06
        %v373 = vmul.f32 %v372, %v372
        %374 = vadd.xlane.f32.xlu0 %v373
        %v375 = vpop.xlane.xlu0 %374
        %v376 = vrsqrt.pop %v375
        %v377 = vmul.f32 %v376, %v375
        %v378 = vmul.f32 %v377, %v376
        %v379 = vmul.f32 0.5, %v378
        %v380 = vsub.f32 1.5, %v379
        %v381 = vmul.f32 %v376, %v380
        %v382 = vmul.f32 %v375, %v381
        %vm383 = vcmp.eq.f32.partialorder %v375, inf
        %v384 = vsel %vm383, %v375, %v382
        %vm385 = vcmp.eq.f32.partialorder %v375, 0.0
        %v386 = vand.u32 %v375, 2147483648
        %v387 = vsel %vm385, %v386, %v384
        %v388 = vsub.f32 %v350, %v352
        %v389 = vadd.f32 %v388, 1e-06
        %v390 = vmul.f32 %v389, %v389
        %391 = vadd.xlane.f32.xlu0 %v390
        %v392 = vpop.xlane.xlu0 %391
        %v393 = vrsqrt.pop %v392
        %v394 = vmul.f32 %v393, %v392
        %v395 = vmul.f32 %v394, %v393
        %v396 = vmul.f32 0.5, %v395
        %v397 = vsub.f32 1.5, %v396
        %v398 = vmul.f32 %v393, %v397
        %v399 = vmul.f32 %v392, %v398
        %vm400 = vcmp.eq.f32.partialorder %v392, inf
        %v401 = vsel %vm400, %v392, %v399
        %vm402 = vcmp.eq.f32.partialorder %v392, 0.0
        %v403 = vand.u32 %v392, 2147483648
        %v404 = vsel %vm402, %v403, %v401
        %v405 = vsub.f32 %v350, %v353
        %v406 = vadd.f32 %v405, 1e-06
        %v407 = vmul.f32 %v406, %v406
        %408 = vadd.xlane.f32.xlu0 %v407
        %v409 = vpop.xlane.xlu0 %408
        %v410 = vrsqrt.pop %v409
        %v411 = vmul.f32 %v410, %v409
        %v412 = vmul.f32 %v411, %v410
        %v413 = vmul.f32 0.5, %v412
        %v414 = vsub.f32 1.5, %v413
        %v415 = vmul.f32 %v410, %v414
        %v416 = vmul.f32 %v409, %v415
        %vm417 = vcmp.eq.f32.partialorder %v409, inf
        %v418 = vsel %vm417, %v409, %v416
        %vm419 = vcmp.eq.f32.partialorder %v409, 0.0
        %v420 = vand.u32 %v409, 2147483648
        %v421 = vsel %vm419, %v420, %v418
        %v422 = vadd.f32 %v370, 1.0
        %v423 = vsub.f32 %v422, %v387
        %v424 = vmax.f32 %v423, 0.0
        %v425 = vsub.f32 %v370, %v404
        %v426 = vadd.f32 %v425, 1.0
        %v427 = vmax.f32 %v426, 0.0
        %v428 = vsub.f32 %v404, %v421
        %v429 = vadd.f32 %v428, 1.0
        %v430 = vmax.f32 %v429, 0.0
        %v431 = vld [vmem:[%s4] sm:$0x1]
        %v432 = vmul.f32 %v431, %v431
        %v433 = vrcp.pop %v432
        %v434 = vmul.f32 %v432, %v433
        %v435 = vsub.f32 1.0, %v434
        %v436 = vmul.f32 %v433, %v435
        %v437 = vadd.f32 %v433, %v436
        %vm438 = vweird.f32 %v432
        %vm439 = vweird.f32 %v433
        %vm440 = vmor %vm438, %vm439
        %v441 = vsel %vm440, %v433, %v437
        %v442 = vand.u32 2147483647, %v432
        %vm443 = vcmp.eq.f32.partialorder %v442, 8.507059e+37
        %v444 = vand.u32 %v432, 2147483648
        %v445 = vor.u32 1.1754944e-38, %v444
        %v446 = vsel %vm443, %v445, %v441
        %v447 = vmul.f32 0.5, %v446
        %v448 = vld [vmem:[#allocation2] sm:$0x1]
        %v449 = vadd.f32 %v424, %v427
        %v450 = vrot.slane %v449, 4
        %v451 = vadd.f32 %v449, %v450
        %v452 = vrot.slane %v451, 2
        %v453 = vadd.f32 %v451, %v452
        %v454 = vrot.slane %v453, 1
        %v455 = vadd.f32 %v453, %v454
        %v456 = vmul.f32 %v447, %v455
        %v457 = vrot.slane %v430, 4
        %v458 = vadd.f32 %v430, %v457
        %v459 = vrot.slane %v458, 2
        %v460 = vadd.f32 %v458, %v459
        %v461 = vrot.slane %v460, 1
        %v462 = vadd.f32 %v460, %v461
        %v463 = vmul.f32 %v447, %v462
        %465 = vrot.lane.b32.xlu0 %v463, 127
        %v466 = vpop.permute.xlu0 %465
        %v468 = vadd.f32 %v456, %v466
        %v469 = vadd.f32 %v448, %v468
        %vm470 = vcmask 0
        %471 = vst.msk [vmem:[#allocation2] sm:$0x1] %vm470, %v469
        %p472 = scmp.eq.s32.totalorder %s26, 1
        // Predicated region
        $region61: #{tpu_custom_call.1} parent=39 // pred_check
          %p473 = pneg %p472
        $region62: #{tpu_custom_call.1} parent=39 // pred_check_branch
          %475 = sbr.rel (%p473) target = $region64
        $region63: #{tpu_custom_call.1} parent=39 // pred_region
          %v476 = vld [vmem:[#allocation2] sm:$0x1]
          %v477 = vmul.f32 %v476, 0.0625
          %v478 = vadd.f32 %v477, 0.5
          %479 = vst.msk [vmem:[#allocation11] sm:$0x1] %vm470, %v478
        $region64: #{tpu_custom_call.1} parent=39 // pred_fallthru
          _
        // Predicated region
        $region65: #{tpu_custom_call.1} parent=39 // pred_check
          %p480 = pneg %p164
        $region66: #{tpu_custom_call.1} parent=39 // pred_check_branch
          %482 = sbr.rel (%p480) target = $region68
        $region67: #{tpu_custom_call.1} parent=39 // pred_region
          %484 = vsyncadd [#allocation5], 0
          %s486 = sshll.u32 [#allocation11], 4
          %s487 = int_to_ptr.vmem [resolvable:$true] %s486
          %s488 = sshll.u32 %s5, 4
          %s489 = int_to_ptr.hbm [resolvable:$true] %s488
          %491 = dma.vmem_to_hbm [thread:$0]  %s487, 16, %s489, [#allocation5]
        $region68: #{tpu_custom_call.1} parent=39 // pred_fallthru
          _
        // Predicated region
        $region69: #{tpu_custom_call.1} parent=39 // pred_check
          %p492 = pneg %p164
        $region70: #{tpu_custom_call.1} parent=39 // pred_check_branch
          %494 = sbr.rel (%p492) target = $region72
        $region71: #{tpu_custom_call.1} parent=39 // pred_region
          %496 = dma.done [#allocation5], 16
        $region72: #{tpu_custom_call.1} parent=39 // pred_fallthru
          _
      $region40: #{tpu_custom_call.1} parent=5 // pred_fallthru
        _
      %p497 = scmp.le.s32.totalorder 2, %s21
      // Predicated region
      $region73: #{tpu_custom_call.1} parent=5 // pred_check
        %p498 = pneg %p497
      $region74: #{tpu_custom_call.1} parent=5 // pred_check_branch
        %500 = sbr.rel (%p498) target = $region76
      $region75: #{tpu_custom_call.1} parent=5 // pred_region
        %s501 = ssub.s32 %s21, 2
      $region76: #{tpu_custom_call.1} parent=5 // pred_fallthru
        _
    $region6: #{tpu_custom_call.1} parent=1 // loop_footer
      %s25 = sadd.s32 1, %s21
    $region7: #{tpu_custom_call.1} parent=1 // loop_footer_branch
      %20 = sbr.rel target = $region3
    $region8: #{tpu_custom_call.1} parent=1 // loop_exit
      _
    %502 = vsyncpa [#allocation4], 1
    %s503 = scalar_lea.sflag [#allocation4], 1
    %504 = vsyncpa %s503, 1
    %505 = vsyncpa [#allocation7], 1
    %s506 = scalar_lea.sflag [#allocation7], 1
    %507 = vsyncpa %s506, 1
    %508 = vsyncpa [#allocation10], 1
    %s509 = scalar_lea.sflag [#allocation10], 1
    %510 = vsyncpa %s509, 1
    %511 = vsyncpa [#allocation5], 1
    %s512 = scalar_lea.sflag [#allocation5], 1
    %513 = vsyncpa %s512, 1

</llo_original>
